<compile_context>
chip_gen: v7x
topology: tpu7x:2x2x1
jax: 0.10.0
libtpu: 0.0.40
codegen_flags: <defaults>
</compile_context>

<pallas_src>
import functools
import math

import jax
import jax.numpy as jnp
from jax.experimental import pallas as pl
from jax.experimental.pallas import tpu as pltpu


_LANES = 512        # wide, lane-dense last dim (multiple of 128)
_BLOCK_ROWS = 256   # 256 x 512 x 4B = 512 KiB per f32 tile (fits v5e/v6e/v7x VMEM budgets)


# --------------------------------------------------------------------------- #
# Kernels
# --------------------------------------------------------------------------- #
def _make_hostnoise_kernel(noise_method):
    """Elementwise kernel; pre-generated Gaussian noise streamed in as a tile."""

    def kernel(coef_ref, x_ref, g_ref, o_ref):
        coef = coef_ref[0]
        x = x_ref[...].astype(jnp.float32)
        g = jnp.clip(g_ref[...].astype(jnp.float32), -3.0, 3.0)
        if noise_method == 'add':
            out = x + g * coef
        else:  # 'mul'
            out = x * (g * coef + 1.0)
        o_ref[...] = out.astype(o_ref.dtype)

    return kernel


def _make_hwprng_kernel(noise_method):
    """Elementwise kernel; clipped Gaussian noise drawn from the TPU PRNG."""

    def kernel(seed_ref, coef_ref, x_ref, o_ref):
        # Per-tile seed so every grid step draws a distinct noise stream.
        pltpu.prng_seed(seed_ref[0], pl.program_id(0))
        coef = coef_ref[0]
        x = x_ref[...].astype(jnp.float32)
        g = jnp.clip(pltpu.stateful_normal(x.shape, jnp.float32), -3.0, 3.0)
        if noise_method == 'add':
            out = x + g * coef
        else:  # 'mul'
            out = x * (g * coef + 1.0)
        o_ref[...] = out.astype(o_ref.dtype)

    return kernel


# --------------------------------------------------------------------------- #
# Wrapper
# --------------------------------------------------------------------------- #
def _tile_geometry(total):
    """Pad the flat length so the (block_rows, _LANES) grid divides evenly."""
    rows = -(-total // _LANES)
    if rows <= _BLOCK_ROWS:
        block_rows = rows          # single tile: full-extent block is always legal
        grid_rows = 1
    else:
        block_rows = _BLOCK_ROWS
        grid_rows = -(-rows // block_rows)
        rows = grid_rows * block_rows
    return rows * _LANES, rows, block_rows, grid_rows


@functools.partial(
    jax.jit, static_argnames=('noise_scale', 'noise_method', 'noise_range'))
def _noquan_add_noise(x, seed, *, noise_scale, noise_method, noise_range):
    if noise_method not in ('add', 'mul'):
        raise ValueError(f'unsupported noise_method: {noise_method}')

    orig_shape = x.shape
    orig_dtype = x.dtype
    total = math.prod(orig_shape)
    padded, rows, block_rows, grid_rows = _tile_geometry(total)

    # ---- global reduction (factor), computed once in the wrapper ------------
    # Skipped entirely for 'mul': the reference ignores noise_range there.
    if noise_method == 'add':
        xr = x.astype(jnp.float32)
        if noise_range == 'max':
            factor = jnp.max(xr)
        elif noise_range == 'std':
            factor = jnp.std(xr, ddof=1)        # torch .std() is unbiased
        elif noise_range == 'max_min':
            factor = jnp.max(xr) - jnp.min(xr)
        elif noise_range == 'maxabs_2':
            factor = 2.0 * jnp.max(jnp.abs(xr))
        else:
            raise ValueError(f'unsupported noise_range: {noise_range}')
        coef = factor * jnp.float32(noise_scale)
    else:
        coef = jnp.asarray(noise_scale, dtype=jnp.float32)
    coef_arr = jnp.reshape(coef.astype(jnp.float32), (1,))

    # ---- lane-dense 2D slab (zero-padded; padding is sliced off afterwards) -
    x_flat = x.reshape(-1)
    if padded != total:
        x_flat = jnp.pad(x_flat, (0, padded - total))
    x2d = x_flat.reshape(rows, _LANES)

    itemsize = jnp.dtype(orig_dtype).itemsize
    compiler_params = pltpu.CompilerParams(
        dimension_semantics=('parallel',),      # shard tiles across v7x's 2 TCs
        vmem_limit_bytes=32 * 1024 * 1024,
    )

    use_hw_prng = jax.default_backend() == 'tpu'

    if use_hw_prng:
        # Noise drawn in-kernel: 1 read + 1 write of HBM traffic.
        seed_arr = jnp.full((1,), seed, dtype=jnp.int32)
        cost = pl.CostEstimate(
            flops=4 * padded,
            transcendentals=padded,
            bytes_accessed=2 * padded * itemsize,
        )
        out2d = pl.pallas_call(
            _make_hwprng_kernel(noise_method),
            out_shape=jax.ShapeDtypeStruct((rows, _LANES), orig_dtype),
            grid_spec=pltpu.PrefetchScalarGridSpec(
                num_scalar_prefetch=2,
                grid=(grid_rows,),
                in_specs=[pl.BlockSpec((block_rows, _LANES),
                                       lambda i, seed_r, coef_r: (i, 0))],
                out_specs=pl.BlockSpec((block_rows, _LANES),
                                       lambda i, seed_r, coef_r: (i, 0)),
            ),
            compiler_params=compiler_params,
            cost_estimate=cost,
        )(seed_arr, coef_arr, x2d)
    else:
        # Portable path (e.g. Pallas interpret mode): noise generated by XLA
        # and streamed through the same tiled kernel.
        key = jax.random.PRNGKey(jnp.asarray(seed, dtype=jnp.uint32))
        g2d = jax.random.normal(key, (rows, _LANES), dtype=jnp.float32)
        cost = pl.CostEstimate(
            flops=4 * padded,
            transcendentals=0,
            bytes_accessed=padded * (2 * itemsize + 4),
        )
        out2d = pl.pallas_call(
            _make_hostnoise_kernel(noise_method),
            out_shape=jax.ShapeDtypeStruct((rows, _LANES), orig_dtype),
            grid_spec=pltpu.PrefetchScalarGridSpec(
                num_scalar_prefetch=1,
                grid=(grid_rows,),
                in_specs=[pl.BlockSpec((block_rows, _LANES),
                                       lambda i, coef_r: (i, 0)),
                          pl.BlockSpec((block_rows, _LANES),
                                       lambda i, coef_r: (i, 0))],
                out_specs=pl.BlockSpec((block_rows, _LANES),
                                       lambda i, coef_r: (i, 0)),
            ),
            compiler_params=compiler_params,
            cost_estimate=cost,
        )(coef_arr, x2d, g2d)

    return out2d.reshape(-1)[:total].reshape(orig_shape)


class NoQuan:
    """JAX/Pallas port of quant_util.NoQuan (forward pass only)."""

    def __init__(self, bit=None, noise_scale=0, noise_method='add',
                 noise_range='max', int_flag=False, *args, **kwargs):
        self.noise_scale = noise_scale
        self.noise_method = noise_method
        self.noise_range = noise_range
        self.int_flag = int_flag

    def __call__(self, x, seed=0):
        if self.noise_scale != 0:
            x = _noquan_add_noise(
                x, seed,
                noise_scale=float(self.noise_scale),
                noise_method=self.noise_method,
                noise_range=self.noise_range)
        if self.int_flag:
            raise ValueError('NoQuan cannot support int_flag:True. ')
        return x

    def get_int(self, x):
        return (x, 1)

    def get_quant_params(self):
        return {
            'quant_name': 'None',
            'noise_scale': self.noise_scale,
            'noise_method': self.noise_method,
            'noise_range': self.noise_range,
        }


if __name__ == "__main__":
    key = jax.random.PRNGKey(0)
    # NCHW input, consistent with typical use on conv weights/activations.
    x = jax.random.normal(key, (2, 4, 16, 16), dtype=jnp.float32)

    # 1) default config: noise_scale=0 -> identity forward
    y_id = NoQuan(noise_scale=0)(x)
    jax.block_until_ready(y_id)
    assert y_id.shape == x.shape and y_id.dtype == x.dtype
    assert bool(jnp.all(y_id == x))

    # 2) noisy 'add' + 'max': exercises reduction + tiled elementwise kernel
    y_noise = NoQuan(noise_scale=0.074, noise_method='add', noise_range='max')(x, seed=0)
    jax.block_until_ready(y_noise)
    assert y_noise.shape == x.shape and y_noise.dtype == x.dtype
    # additive noise is bounded by 3 * max(x) * noise_scale
    max_dev = float(jnp.max(jnp.abs(y_noise - x)))
    bound = 3.0 * float(jnp.max(x)) * 0.074 + 1e-5
    assert max_dev <= bound, (max_dev, bound)

    # 3) 'mul' + 'maxabs_2' (factor reduction is skipped for 'mul')
    y_mul = NoQuan(noise_scale=0.05, noise_method='mul', noise_range='maxabs_2')(x, seed=7)
    jax.block_until_ready(y_mul)
    assert y_mul.shape == x.shape

    # 4) ragged shape (not a multiple of 128) + 'std' range: pad/slice path
    x2 = jax.random.normal(jax.random.PRNGKey(1), (3, 5, 7), dtype=jnp.float32)
    y_std = NoQuan(noise_scale=0.1, noise_method='add', noise_range='std')(x2, seed=3)
    jax.block_until_ready(y_std)
    assert y_std.shape == x2.shape

    print("KERNEL_OK")
</pallas_src>

<mosaic_0001>
module attributes {stable_mosaic.version = 11 : i64} {
  func.func @kernel(%arg0: i32, %arg1: memref<1xf32, #tpu.memory_space<smem>>, %arg2: memref<4x512xf32, #tpu.memory_space<vmem>>, %arg3: memref<4x512xf32, #tpu.memory_space<vmem>>, %arg4: memref<4x512xf32, #tpu.memory_space<vmem>>) attributes {dimension_semantics = [#tpu.dimension_semantics<parallel>], iteration_bounds = array<i64: 1>, scalar_prefetch = 1 : i64, scratch_operands = 0 : i64, tpu.core_type = #tpu.core_type<tc>, window_params = [{transform_indices = @transform_0, window_bounds = array<i64: 4, 512>}, {transform_indices = @transform_1, window_bounds = array<i64: 4, 512>}, {transform_indices = @transform_2, window_bounds = array<i64: 4, 512>}]} {
    %c0 = arith.constant 0 : index
    %0 = memref.load %arg1[%c0] : memref<1xf32, #tpu.memory_space<smem>>
    %c0_0 = arith.constant 0 : index
    %c0_1 = arith.constant 0 : index
    %1 = vector.load %arg2[%c0_0, %c0_1] : memref<4x512xf32, #tpu.memory_space<vmem>>, vector<4x512xf32>
    %c0_2 = arith.constant 0 : index
    %c0_3 = arith.constant 0 : index
    %2 = vector.load %arg3[%c0_2, %c0_3] : memref<4x512xf32, #tpu.memory_space<vmem>>, vector<4x512xf32>
    %cst = arith.constant -3.000000e+00 : f32
    %cst_4 = arith.constant 3.000000e+00 : f32
    %3 = vector.broadcast %cst : f32 to vector<4x512xf32>
    %4 = arith.maximumf %3, %2 : vector<4x512xf32>
    %5 = vector.broadcast %cst_4 : f32 to vector<4x512xf32>
    %6 = arith.minimumf %5, %4 : vector<4x512xf32>
    %7 = vector.broadcast %0 : f32 to vector<4x512xf32>
    %8 = arith.mulf %6, %7 : vector<4x512xf32>
    %9 = arith.addf %1, %8 : vector<4x512xf32>
    %c0_5 = arith.constant 0 : index
    %c0_6 = arith.constant 0 : index
    %10 = vector.load %arg4[%c0_5, %c0_6] : memref<4x512xf32, #tpu.memory_space<vmem>>, vector<4x512xf32>
    tpu.vector_store %arg4[%c0_5, %c0_6], %9 {strides = array<i32>} : memref<4x512xf32, #tpu.memory_space<vmem>>, vector<4x512xf32>,
    return
  }
  func.func @transform_0(%arg0: i32, %arg1: memref<1xf32, #tpu.memory_space<smem>>) -> (i32, i32) {
    %c0_i32 = arith.constant 0 : i32
    %c0_i32_0 = arith.constant 0 : i32
    return %arg0, %c0_i32 : i32, i32
  }
  func.func @transform_1(%arg0: i32, %arg1: memref<1xf32, #tpu.memory_space<smem>>) -> (i32, i32) {
    %c0_i32 = arith.constant 0 : i32
    %c0_i32_0 = arith.constant 0 : i32
    return %arg0, %c0_i32 : i32, i32
  }
  func.func @transform_2(%arg0: i32, %arg1: memref<1xf32, #tpu.memory_space<smem>>) -> (i32, i32) {
    %c0_i32 = arith.constant 0 : i32
    %c0_i32_0 = arith.constant 0 : i32
    return %arg0, %c0_i32 : i32, i32
  }
}

</mosaic_0001>

<llo_original>
// kernel: _noquan_add_noise.1
$region0: #{_noquan_add_noise.1}
  #allocation0 [shape = 'u32[]', space=smem, size = 0x4, offset = 0x4, fixed_abs, tag = 'smem constant byte address 0x4 - core index']
  #allocation1 [shape = 'u32[144,128]{1,0:T(1,128)}', space=vmem, size = 0x12000, scoped, tag = 'internal scratch']
  #allocation2 [shape = 's32[1]{0}', space=sflag, size = 0x4, scoped, tag = 'scoped memory for _noquan_add_noise.1']
  #allocation3 [shape = 'f32[1]{0:T(128)S(6)}', space=smem, size = 0x200, scoped, tag = 'prefetched SMEM operand 0']
  %s0 = inlined_call_operand.<no memory space> [shape: f32[1], index: 0, kind: input, shape index: {}]
  %s1 = inlined_call_operand.vmem [shape: f32[4,512], index: 1, kind: input, shape index: {}]
  %s2 = inlined_call_operand.vmem [shape: f32[4,512], index: 2, kind: input, shape index: {}]
  %s3 = inlined_call_operand.vmem [shape: f32[4,512], index: 3, kind: output, shape index: {}]
  %s4 = sld [smem:[#allocation0]]
  $region18: #{_noquan_add_noise.1} parent=0
    _
  %s6 = ssub.s32 1, %s4
  %s7 = scalar_select 0, %s6, %s4
  %8 = sst [smem:[#allocation3]] %s0
  // Predicated region
  $region2: #{_noquan_add_noise.1} parent=0 // pred_check
    _
  $region3: #{_noquan_add_noise.1} parent=0 // pred_check_branch
    %10 = sbr.rel (0) target = $region5
  $region4: #{_noquan_add_noise.1} parent=0 // pred_region
    _
  $region5: #{_noquan_add_noise.1} parent=0 // pred_fallthru
    _
  // Predicated region
  $region6: #{_noquan_add_noise.1} parent=0 // pred_check
    _
  $region7: #{_noquan_add_noise.1} parent=0 // pred_check_branch
    %12 = sbr.rel (0) target = $region9
  $region8: #{_noquan_add_noise.1} parent=0 // pred_region
    _
  $region9: #{_noquan_add_noise.1} parent=0 // pred_fallthru
    _
  %s13 = sld [smem:[#allocation3]]
  %v14 = vld [vmem:[%s1] sm:$0xff]
  %v15 = vld [vmem:[%s1 + $0x8] sm:$0xff]
  %v16 = vld [vmem:[%s2] sm:$0xff]
  %v17 = vld [vmem:[%s2 + $0x8] sm:$0xff]
  %v18 = vmax.f32 %v16, -3.0
  %v19 = vmax.f32 %v17, -3.0
  %v20 = vmin.f32 %v18, 3.0
  %v21 = vmin.f32 %v19, 3.0
  %v22 = vstv %s13
  %v23 = vmul.f32 %v20, %v22
  %v24 = vmul.f32 %v21, %v22
  %v25 = vadd.f32 %v14, %v23
  %v26 = vadd.f32 %v15, %v24
  %27 = vst [vmem:[%s3] sm:$0xff] %v25
  %28 = vst [vmem:[%s3 + $0x8] sm:$0xff] %v26
  // Predicated region
  $region10: #{_noquan_add_noise.1} parent=0 // pred_check
    _
  $region11: #{_noquan_add_noise.1} parent=0 // pred_check_branch
    %30 = sbr.rel (0) target = $region13
  $region12: #{_noquan_add_noise.1} parent=0 // pred_region
    _
  $region13: #{_noquan_add_noise.1} parent=0 // pred_fallthru
    _
  // Predicated region
  $region14: #{_noquan_add_noise.1} parent=0 // pred_check
    _
  $region15: #{_noquan_add_noise.1} parent=0 // pred_check_branch
    %32 = sbr.rel (0) target = $region17
  $region16: #{_noquan_add_noise.1} parent=0 // pred_region
    _
  $region17: #{_noquan_add_noise.1} parent=0 // pred_fallthru
    _

</llo_original>
